<compile_context>
chip_gen: v5e
topology: v5e:2x2
jax: 0.10.0
libtpu: 0.0.40
codegen_flags: <defaults>
</compile_context>

<pallas_src>
import jax
import jax.numpy as jnp
from jax.experimental import pallas as pl
from jax.experimental.pallas import tpu as pltpu

_LANES = 128
_TARGET_BLOCK_BYTES = 2 * 1024 * 1024  # ~2 MiB of x per grid step


def _layer_scale_kernel(x_ref, gamma_ref, o_ref):
    # x_ref: (tm, Dp), gamma_ref: (1, Dp) -> broadcast multiply on the VPU.
    o_ref[...] = x_ref[...] * gamma_ref[...]


def _sublane_multiple(dtype) -> int:
    itemsize = jnp.dtype(dtype).itemsize
    return {4: 8, 2: 16, 1: 32}.get(itemsize, 8)


def _pick_row_tile(M: int, D: int, dtype) -> int:
    """Largest row tile that (a) targets ~2 MiB per x block, (b) is a multiple
    of the sublane packing for `dtype`, or (c) is the full extent M."""
    itemsize = jnp.dtype(dtype).itemsize
    sub = _sublane_multiple(dtype)
    tm = max(sub, _TARGET_BLOCK_BYTES // max(1, D * itemsize))
    tm = (tm // sub) * sub
    if tm >= M:
        return M  # full-extent block is always layout-legal
    return tm


def layer_scale(x: jax.Array, gamma: jax.Array) -> jax.Array:
    """LayerScale: out = x * gamma, gamma (D,) broadcast over all leading dims."""
    orig_shape = x.shape
    D = orig_shape[-1]
    assert gamma.shape == (D,), f"gamma shape {gamma.shape} must be ({D},)"

    # Explicit dtype cast so the in-kernel multiply stays in x.dtype.
    gamma = gamma.astype(x.dtype)

    # Flatten leading dims -> (M, D).
    x2 = x.reshape(-1, D)
    M = x2.shape[0]

    # Lane-dense repack: narrow D wastes lanes and forces masked stores. When
    # 128 % D == 0 the row-major flatten repeats the gamma pattern exactly
    # every D elements, so we can fold rows into a 128-wide last dim and tile
    # gamma to match. Pure layout plumbing — semantics unchanged.
    if D < _LANES and _LANES % D == 0 and (M * D) % _LANES == 0:
        reps = _LANES // D
        Dp = _LANES
        Mp = (M * D) // _LANES
        x2 = x2.reshape(Mp, Dp)
        gamma2 = jnp.tile(gamma, reps).reshape(1, Dp)
    else:
        Mp, Dp = M, D
        gamma2 = gamma.reshape(1, D)

    tm = _pick_row_tile(Mp, Dp, x.dtype)
    grid = (pl.cdiv(Mp, tm),)

    out = pl.pallas_call(
        _layer_scale_kernel,
        out_shape=jax.ShapeDtypeStruct((Mp, Dp), x.dtype),
        grid_spec=pltpu.PrefetchScalarGridSpec(
            num_scalar_prefetch=0,
            grid=grid,
            in_specs=[
                pl.BlockSpec((tm, Dp), lambda i: (i, 0)),
                pl.BlockSpec((1, Dp), lambda i: (0, 0)),
            ],
            out_specs=pl.BlockSpec((tm, Dp), lambda i: (i, 0)),
        ),
        compiler_params=pltpu.CompilerParams(
            # "parallel" lets v7x's 2 TensorCores split the row-tile axis.
            dimension_semantics=("parallel",),
            # ~2 MiB blocks double-buffered on in+out ≈ 8 MiB; raise the scoped
            # limit so v5e's 16 MiB default is never the constraint, while
            # staying well under v7x's 64 MiB physical VMEM.
            vmem_limit_bytes=32 * 1024 * 1024,
        ),
    )(x2, gamma2)

    return out.reshape(orig_shape)


if __name__ == "__main__":
    init_values = 1e-05
    key = jax.random.PRNGKey(0)

    # Case 1: narrow feature dim (exercises the lane-dense repack path),
    # shapes matching the module's token layout (B, N, D).
    B, N, D = 2, 8, 32
    gamma = init_values * jnp.ones((D,), dtype=jnp.float32)
    x = jax.random.normal(key, (B, N, D), dtype=jnp.float32)
    out = jax.block_until_ready(layer_scale(x, gamma))
    ref = x * gamma
    assert out.shape == x.shape and out.dtype == x.dtype
    assert jnp.allclose(out, ref, rtol=1e-6, atol=1e-6)

    # Case 2: lane-aligned feature dim + bf16 input (exercises the direct path
    # and the explicit gamma dtype cast).
    B2, N2, D2 = 2, 8, 128
    gamma2 = init_values * jnp.ones((D2,), dtype=jnp.float32)
    x_bf16 = jax.random.normal(jax.random.PRNGKey(1), (B2, N2, D2),
                               dtype=jnp.float32).astype(jnp.bfloat16)
    out2 = jax.block_until_ready(layer_scale(x_bf16, gamma2))
    ref2 = x_bf16 * gamma2.astype(jnp.bfloat16)
    assert out2.shape == x_bf16.shape and out2.dtype == x_bf16.dtype
    assert jnp.allclose(out2.astype(jnp.float32), ref2.astype(jnp.float32),
                        rtol=1e-2, atol=1e-7)

    print("KERNEL_OK")
</pallas_src>

<mosaic_0001>
module attributes {stable_mosaic.version = 11 : i64} {
  func.func @_layer_scale_kernel(%arg0: i32, %arg1: memref<4x128xf32, #tpu.memory_space<vmem>>, %arg2: memref<1x128xf32, #tpu.memory_space<vmem>>, %arg3: memref<4x128xf32, #tpu.memory_space<vmem>>) attributes {dimension_semantics = [#tpu.dimension_semantics<parallel>], iteration_bounds = array<i64: 1>, scalar_prefetch = 0 : i64, scratch_operands = 0 : i64, tpu.core_type = #tpu.core_type<tc>, window_params = [{transform_indices = @transform_0, window_bounds = array<i64: 4, 128>}, {pipeline_mode = #tpu.pipeline_mode<synchronous>, transform_indices = @transform_1, window_bounds = array<i64: 1, 128>}, {transform_indices = @transform_2, window_bounds = array<i64: 4, 128>}]} {
    %c0 = arith.constant 0 : index
    %c0_0 = arith.constant 0 : index
    %0 = vector.load %arg1[%c0, %c0_0] : memref<4x128xf32, #tpu.memory_space<vmem>>, vector<4x128xf32>
    %c0_1 = arith.constant 0 : index
    %c0_2 = arith.constant 0 : index
    %1 = vector.load %arg2[%c0_1, %c0_2] : memref<1x128xf32, #tpu.memory_space<vmem>>, vector<1x128xf32>
    %2 = vector.broadcast %1 : vector<1x128xf32> to vector<4x128xf32>
    %3 = arith.mulf %0, %2 : vector<4x128xf32>
    %c0_3 = arith.constant 0 : index
    %c0_4 = arith.constant 0 : index
    %4 = vector.load %arg3[%c0_3, %c0_4] : memref<4x128xf32, #tpu.memory_space<vmem>>, vector<4x128xf32>
    tpu.vector_store %arg3[%c0_3, %c0_4], %3 {strides = array<i32>} : memref<4x128xf32, #tpu.memory_space<vmem>>, vector<4x128xf32>,
    return
  }
  func.func @transform_0(%arg0: i32) -> (i32, i32) {
    %c0_i32 = arith.constant 0 : i32
    %c0_i32_0 = arith.constant 0 : i32
    return %arg0, %c0_i32 : i32, i32
  }
  func.func @transform_1(%arg0: i32) -> (i32, i32) {
    %c0_i32 = arith.constant 0 : i32
    %c0_i32_0 = arith.constant 0 : i32
    %c0_i32_1 = arith.constant 0 : i32
    return %c0_i32, %c0_i32_0 : i32, i32
  }
  func.func @transform_2(%arg0: i32) -> (i32, i32) {
    %c0_i32 = arith.constant 0 : i32
    %c0_i32_0 = arith.constant 0 : i32
    return %arg0, %c0_i32 : i32, i32
  }
}

</mosaic_0001>

<llo_original>
// kernel: tpu_custom_call.1
$region0: #{tpu_custom_call.1}
  #allocation0 [shape = 'u32[]', space=smem, size = 0x4, offset = 0x4, fixed_abs, tag = 'smem constant byte address 0x4 - core index']
  #allocation1 [shape = 'u32[72,128]{1,0:T(1,128)}', space=vmem, size = 0x9000, scoped, tag = 'internal scratch']
  %s0 = inlined_call_operand.hbm [shape: f32[4,128], index: 0, kind: input, shape index: {}]
  %s1 = inlined_call_operand.hbm [shape: f32[1,128], index: 1, kind: input, shape index: {}]
  %s2 = inlined_call_operand.hbm [shape: f32[4,128], index: 2, kind: output, shape index: {}]
  %s3 = sld [smem:[#allocation0]]
  $region26: #{tpu_custom_call.1} parent=0
    _
  %s5 = ssub.s32 1, %s3
  %s6 = scalar_select 0, %s5, %s3
  $region1: #{tpu_custom_call.1} parent=0
    #allocation2 [shape = 'u8[2048]{0}', space=vmem, size = 0x800, scoped, tag = 'input window, operand 0, single buffered']
    #allocation3 [shape = 's32[1]{0}', space=sflag, size = 0x4, scoped, tag = 'scoped memory for tpu_custom_call.1']
    #allocation4 [shape = 's32[1]{0}', space=sflag, size = 0x4, scoped, tag = 'scoped memory for tpu_custom_call.1']
    #allocation5 [shape = 'u8[512]{0}', space=vmem, size = 0x400, scoped, tag = 'input window, operand 1, single buffered']
    #allocation6 [shape = 's32[1]{0}', space=sflag, size = 0x4, scoped, tag = 'scoped memory for tpu_custom_call.1']
    #allocation7 [shape = 'u8[2048]{0}', space=vmem, size = 0x800, scoped, tag = 'output window, operand 0, single buffered']
    %7 = vsyncpa [#allocation3], 0
    %8 = vsyncpa [#allocation6], 0
    %9 = vsyncpa [#allocation4], 0
    // Predicated region
    $region2: #{tpu_custom_call.1} parent=1 // pred_check
      _
    $region3: #{tpu_custom_call.1} parent=1 // pred_check_branch
      %11 = sbr.rel (0) target = $region5
    $region4: #{tpu_custom_call.1} parent=1 // pred_region
      %13 = vsyncadd [#allocation3], 0
      %s15 = sshll.u32 %s0, 4
      %s16 = int_to_ptr.hbm [resolvable:$true] %s15
      %s17 = sshll.u32 [#allocation2], 4
      %s18 = int_to_ptr.vmem [resolvable:$true] %s17
      %20 = dma.hbm_to_vmem [thread:$0]  %s16, 64, %s18, [#allocation3]
    $region5: #{tpu_custom_call.1} parent=1 // pred_fallthru
      _
    // Predicated region
    $region6: #{tpu_custom_call.1} parent=1 // pred_check
      _
    $region7: #{tpu_custom_call.1} parent=1 // pred_check_branch
      %22 = sbr.rel (0) target = $region9
    $region8: #{tpu_custom_call.1} parent=1 // pred_region
      %24 = vsyncadd [#allocation6], 0
      %s26 = sshll.u32 %s1, 4
      %s27 = int_to_ptr.hbm [resolvable:$true] %s26
      %s28 = sshll.u32 [#allocation5], 4
      %s29 = int_to_ptr.vmem [resolvable:$true] %s28
      %31 = dma.hbm_to_vmem [thread:$0]  %s27, 16, %s29, [#allocation6]
    $region9: #{tpu_custom_call.1} parent=1 // pred_fallthru
      _
    // Predicated region
    $region10: #{tpu_custom_call.1} parent=1 // pred_check
      _
    $region11: #{tpu_custom_call.1} parent=1 // pred_check_branch
      %33 = sbr.rel (0) target = $region13
    $region12: #{tpu_custom_call.1} parent=1 // pred_region
      %35 = dma.done [#allocation3], 64
    $region13: #{tpu_custom_call.1} parent=1 // pred_fallthru
      _
    // Predicated region
    $region14: #{tpu_custom_call.1} parent=1 // pred_check
      _
    $region15: #{tpu_custom_call.1} parent=1 // pred_check_branch
      %37 = sbr.rel (0) target = $region17
    $region16: #{tpu_custom_call.1} parent=1 // pred_region
      %39 = dma.done [#allocation6], 16
    $region17: #{tpu_custom_call.1} parent=1 // pred_fallthru
      _
    %v40 = vld [vmem:[#allocation2] sm:$0xf]
    %v41 = vld [vmem:[#allocation5] sm:$0x1]
    %v43 = vperm.slane %v41, 0
    %v45 = vmul.f32 %v40, %v43
    %46 = vst [vmem:[#allocation7] sm:$0xf] %v45
    // Predicated region
    $region18: #{tpu_custom_call.1} parent=1 // pred_check
      _
    $region19: #{tpu_custom_call.1} parent=1 // pred_check_branch
      %48 = sbr.rel (0) target = $region21
    $region20: #{tpu_custom_call.1} parent=1 // pred_region
      %50 = vsyncadd [#allocation4], 0
      %s52 = sshll.u32 [#allocation7], 4
      %s53 = int_to_ptr.vmem [resolvable:$true] %s52
      %s54 = sshll.u32 %s2, 4
      %s55 = int_to_ptr.hbm [resolvable:$true] %s54
      %57 = dma.vmem_to_hbm [thread:$0]  %s53, 64, %s55, [#allocation4]
    $region21: #{tpu_custom_call.1} parent=1 // pred_fallthru
      _
    // Predicated region
    $region22: #{tpu_custom_call.1} parent=1 // pred_check
      _
    $region23: #{tpu_custom_call.1} parent=1 // pred_check_branch
      %59 = sbr.rel (0) target = $region25
    $region24: #{tpu_custom_call.1} parent=1 // pred_region
      %61 = dma.done [#allocation4], 64
    $region25: #{tpu_custom_call.1} parent=1 // pred_fallthru
      _
    %62 = vsyncpa [#allocation3], 1
    %63 = vsyncpa [#allocation6], 1
    %64 = vsyncpa [#allocation4], 1

</llo_original>
